<compile_context>
chip_gen: v5e
topology: v5e:2x2
jax: 0.10.0
libtpu: 0.0.40
codegen_flags: <defaults>
</compile_context>

<pallas_src>
import functools

import jax
import jax.numpy as jnp
from jax import lax
from jax.experimental import pallas as pl
from jax.experimental.pallas import tpu as pltpu


def _conv1x1_tile_kernel(x_ref, w_ref, o_ref):
    # x_ref: (Cin, tp)   channel-major pixel slab, read straight from NCHW
    # w_ref: (Cout, Cin) conv weight (kept in its native PyTorch layout)
    # o_ref: (tp, Cout)  NHWC-ordered output tile
    #
    # Contract lhs dim 0 (Cin) with rhs dim 1 (Cin); f32 accumulation on MXU.
    o_ref[...] = lax.dot_general(
        x_ref[...],
        w_ref[...],
        dimension_numbers=(((0,), (1,)), ((), ())),
        preferred_element_type=jnp.float32,
    ).astype(o_ref.dtype)


def _conv1x1_small_kernel(x_ref, w_ref, o_ref):
    # Whole-batch single grid step for tiny problems.
    # x_ref: (N, Cin, HW); w_ref: (Cout, Cin); o_ref: (N, HW, Cout)
    # N is small on this path (<= 8), so a static unroll is fine.
    for b in range(x_ref.shape[0]):
        o_ref[b, :, :] = lax.dot_general(
            x_ref[b, :, :],
            w_ref[...],
            dimension_numbers=(((0,), (1,)), ((), ())),
            preferred_element_type=jnp.float32,
        ).astype(o_ref.dtype)


def _vmem_limit_bytes(tp, cin, cout, itemsize=4):
    """Scoped-VMEM budget for the tiled path, derived from the tile size."""
    cpad = ((cout + 127) // 128) * 128  # output lane padding
    need = (
        2 * cin * tp * itemsize       # double-buffered activation tile
        + 2 * tp * cpad * itemsize    # double-buffered output tile
        + 2 * cin * cpad * itemsize   # weight buffers
    )
    # 25% headroom; clamp to [16 MiB, 48 MiB] so it also fits v7x (64 MiB/TC).
    return int(min(max(need * 5 // 4, 16 * 1024 * 1024), 48 * 1024 * 1024))


@functools.partial(jax.jit, static_argnames=("pixel_tile",))
def face_bright_head(x_nchw, weight_oc_ic, *, pixel_tile=8192):
    """faceBrightHead.forward.

    x_nchw:       (N, Cin, H, W) float32 activation (NCHW, as in PyTorch).
    weight_oc_ic: (Cout, Cin) float32 -- Conv2d weight (Cout, Cin, 1, 1) squeezed.

    Returns (N, H*W*Cout) float32, matching conv1x1 -> permute(0,2,3,1) -> view.
    """
    assert pixel_tile % 128 == 0, "pixel_tile must be lane-aligned (mult of 128)"
    N, Cin, H, W = x_nchw.shape
    Cout = weight_oc_ic.shape[0]
    HW = H * W

    # Free reshape only -- no activation transpose through HBM.
    x3d = x_nchw.reshape(N, Cin, HW)

    # --- Tiny-problem path: one grid step over the whole batch. ----------------
    # At the module's default 8x8 spatial size the tiled kernel would be pure
    # per-step overhead; a single step halves the fixed cost and removes the
    # pipeline prologue.
    if N * HW <= 1024 and N <= 8:
        out3d = pl.pallas_call(
            _conv1x1_small_kernel,
            out_shape=jax.ShapeDtypeStruct((N, HW, Cout), jnp.float32),
            in_specs=[
                pl.BlockSpec((N, Cin, HW), lambda: (0, 0, 0)),
                pl.BlockSpec((Cout, Cin), lambda: (0, 0)),
            ],
            out_specs=pl.BlockSpec((N, HW, Cout), lambda: (0, 0, 0)),
            compiler_params=pltpu.CompilerParams(
                vmem_limit_bytes=32 * 1024 * 1024,
            ),
        )(x3d, weight_oc_ic)
        return out3d.reshape(N, HW * Cout)

    # --- Tiled path: grid over (batch, pixel tiles). ---------------------------
    if HW <= pixel_tile:
        tp = HW
        # v7x has 2 TensorCores; if the batch axis alone can't provide >= 2
        # parallel grid steps, split the pixel axis into lane-aligned halves.
        if N == 1 and HW >= 256:
            tp = max(128, ((HW // 2 + 127) // 128) * 128)
    else:
        tp = pixel_tile

    grid = (N, pl.cdiv(HW, tp))

    out3d = pl.pallas_call(
        _conv1x1_tile_kernel,
        out_shape=jax.ShapeDtypeStruct((N, HW, Cout), jnp.float32),
        grid_spec=pltpu.PrefetchScalarGridSpec(
            num_scalar_prefetch=0,
            grid=grid,
            in_specs=[
                # Batch dim squeezed, full channel dim, lane-aligned pixel tile
                # read directly out of the NCHW layout.
                pl.BlockSpec((None, Cin, tp), lambda n, p: (n, 0, p)),
                # Weight: constant block index -> fetched once, VMEM resident.
                pl.BlockSpec((Cout, Cin), lambda n, p: (0, 0)),
            ],
            # Full-Cout, contiguous-pixel output block: one contiguous HBM
            # write per step (no external Cout padding / compaction pass).
            out_specs=pl.BlockSpec((None, tp, Cout), lambda n, p: (n, p, 0)),
        ),
        compiler_params=pltpu.CompilerParams(
            # Independent output tiles on both grid axes -> megacore shardable.
            dimension_semantics=("parallel", "parallel"),
            vmem_limit_bytes=_vmem_limit_bytes(tp, Cin, Cout),
        ),
    )(x3d, weight_oc_ic)

    # (N, H*W, Cout) -> (N, H*W*Cout): contiguous collapse, identical ordering
    # to permute(0, 2, 3, 1).contiguous().view(N, -1).
    return out3d.reshape(N, HW * Cout)


def _reference(x, weight):
    return jnp.einsum(
        "nchw,oc->nhwo", x, weight, precision=lax.Precision.HIGHEST
    ).reshape(x.shape[0], -1)


if __name__ == "__main__":
    key = jax.random.PRNGKey(0)
    kx, kw, kx2 = jax.random.split(key, 3)

    # Module defaults: Conv2d(128, 100, 1, 1, 0, bias=False); small spatial.
    N, Cin, H, W = 2, 128, 8, 8
    Cout = 100
    x = jax.random.normal(kx, (N, Cin, H, W), dtype=jnp.float32)
    # torch weight shape is (Cout, Cin, 1, 1); keep the squeezed (Cout, Cin) form.
    weight = jax.random.normal(kw, (Cout, Cin), dtype=jnp.float32) * 0.05

    out = jax.block_until_ready(face_bright_head(x, weight))
    ref = _reference(x, weight)
    assert out.shape == (N, H * W * Cout), out.shape
    assert jnp.allclose(out, ref, atol=1e-3, rtol=1e-3), float(
        jnp.max(jnp.abs(out - ref))
    )

    # Second check exercising the tiled path (grid=(2,2), ragged pixel tail).
    N2, H2, W2 = 2, 24, 24
    x2 = jax.random.normal(kx2, (N2, Cin, H2, W2), dtype=jnp.float32)
    out2 = jax.block_until_ready(face_bright_head(x2, weight, pixel_tile=512))
    ref2 = _reference(x2, weight)
    assert out2.shape == (N2, H2 * W2 * Cout), out2.shape
    assert jnp.allclose(out2, ref2, atol=1e-3, rtol=1e-3), float(
        jnp.max(jnp.abs(out2 - ref2))
    )

    print("KERNEL_OK")
</pallas_src>

<mosaic_0001>
module attributes {stable_mosaic.version = 11 : i64} {
  func.func @_conv1x1_small_kernel(%arg0: memref<2x128x64xf32, #tpu.memory_space<vmem>>, %arg1: memref<100x128xf32, #tpu.memory_space<vmem>>, %arg2: memref<2x64x100xf32, #tpu.memory_space<vmem>>) attributes {dimension_semantics = [], scalar_prefetch = 0 : i64, scratch_operands = 0 : i64, tpu.core_type = #tpu.core_type<tc>} {
    %c0 = arith.constant 0 : index
    %c0_0 = arith.constant 0 : index
    %c0_1 = arith.constant 0 : index
    %0 = vector.load %arg0[%c0, %c0_0, %c0_1] : memref<2x128x64xf32, #tpu.memory_space<vmem>>, vector<1x128x64xf32>
    %1 = vector.shape_cast %0 : vector<1x128x64xf32> to vector<128x64xf32>
    %c0_2 = arith.constant 0 : index
    %c0_3 = arith.constant 0 : index
    %2 = vector.load %arg1[%c0_2, %c0_3] : memref<100x128xf32, #tpu.memory_space<vmem>>, vector<100x128xf32>
    %cst = arith.constant dense<0.000000e+00> : vector<64x100xf32>
    %3 = tpu.matmul %1, %2, %cst {dimension_numbers = #tpu.dot_dimension_numbers<[0], [1], [1], [0], [0, 1, 1, 0], [], []>} : vector<128x64xf32>, vector<100x128xf32>, vector<64x100xf32> -> vector<64x100xf32>
    %c0_4 = arith.constant 0 : index
    %c0_5 = arith.constant 0 : index
    %c0_6 = arith.constant 0 : index
    %4 = vector.load %arg2[%c0_4, %c0_5, %c0_6] : memref<2x64x100xf32, #tpu.memory_space<vmem>>, vector<1x64x100xf32>
    %5 = vector.shape_cast %4 : vector<1x64x100xf32> to vector<64x100xf32>
    %6 = vector.shape_cast %3 : vector<64x100xf32> to vector<1x64x100xf32>
    tpu.vector_store %arg2[%c0_4, %c0_5, %c0_6], %6 {strides = array<i32>} : memref<2x64x100xf32, #tpu.memory_space<vmem>>, vector<1x64x100xf32>,
    %c1 = arith.constant 1 : index
    %c0_7 = arith.constant 0 : index
    %c0_8 = arith.constant 0 : index
    %7 = vector.load %arg0[%c1, %c0_7, %c0_8] : memref<2x128x64xf32, #tpu.memory_space<vmem>>, vector<1x128x64xf32>
    %8 = vector.shape_cast %7 : vector<1x128x64xf32> to vector<128x64xf32>
    %c0_9 = arith.constant 0 : index
    %c0_10 = arith.constant 0 : index
    %9 = vector.load %arg1[%c0_9, %c0_10] : memref<100x128xf32, #tpu.memory_space<vmem>>, vector<100x128xf32>
    %cst_11 = arith.constant dense<0.000000e+00> : vector<64x100xf32>
    %10 = tpu.matmul %8, %9, %cst_11 {dimension_numbers = #tpu.dot_dimension_numbers<[0], [1], [1], [0], [0, 1, 1, 0], [], []>} : vector<128x64xf32>, vector<100x128xf32>, vector<64x100xf32> -> vector<64x100xf32>
    %c1_12 = arith.constant 1 : index
    %c0_13 = arith.constant 0 : index
    %c0_14 = arith.constant 0 : index
    %11 = vector.load %arg2[%c1_12, %c0_13, %c0_14] : memref<2x64x100xf32, #tpu.memory_space<vmem>>, vector<1x64x100xf32>
    %12 = vector.shape_cast %11 : vector<1x64x100xf32> to vector<64x100xf32>
    %13 = vector.shape_cast %10 : vector<64x100xf32> to vector<1x64x100xf32>
    tpu.vector_store %arg2[%c1_12, %c0_13, %c0_14], %13 {strides = array<i32>} : memref<2x64x100xf32, #tpu.memory_space<vmem>>, vector<1x64x100xf32>,
    return
  }
}

</mosaic_0001>

<llo_original>
// kernel: face_bright_head.1
$region0: #{face_bright_head.1}
  #allocation0 [shape = 'u32[]', space=smem, size = 0x4, offset = 0x4, fixed_abs, tag = 'smem constant byte address 0x4 - core index']
  #allocation1 [shape = 'u32[72,128]{1,0:T(1,128)}', space=vmem, size = 0x9000, scoped, tag = 'internal scratch']
  %s0 = inlined_call_operand.vmem [shape: f32[2,128,64], index: 0, kind: input, shape index: {}]
  %s1 = inlined_call_operand.vmem [shape: f32[100,128], index: 1, kind: input, shape index: {}]
  %s2 = inlined_call_operand.vmem [shape: f32[2,64,100], index: 2, kind: output, shape index: {}]
  %s3 = sld [smem:[#allocation0]]
  $region18: #{face_bright_head.1} parent=0
    _
  %s5 = ssub.s32 1, %s3
  %s6 = scalar_select 0, %s5, %s3
  // Predicated region
  $region2: #{face_bright_head.1} parent=0 // pred_check
    _
  $region3: #{face_bright_head.1} parent=0 // pred_check_branch
    %8 = sbr.rel (0) target = $region5
  $region4: #{face_bright_head.1} parent=0 // pred_region
    _
  $region5: #{face_bright_head.1} parent=0 // pred_fallthru
    _
  // Predicated region
  $region6: #{face_bright_head.1} parent=0 // pred_check
    _
  $region7: #{face_bright_head.1} parent=0 // pred_check_branch
    %10 = sbr.rel (0) target = $region9
  $region8: #{face_bright_head.1} parent=0 // pred_region
    _
  $region9: #{face_bright_head.1} parent=0 // pred_fallthru
    _
  %v11 = vld [vmem:[%s0] sm:$0xff]
  %v12 = vld [vmem:[%s0 + $0x8] sm:$0xff]
  %v13 = vld [vmem:[%s0 + $0x10] sm:$0xff]
  %v14 = vld [vmem:[%s0 + $0x18] sm:$0xff]
  %v15 = vld [vmem:[%s0 + $0x20] sm:$0xff]
  %v16 = vld [vmem:[%s0 + $0x28] sm:$0xff]
  %v17 = vld [vmem:[%s0 + $0x30] sm:$0xff]
  %v18 = vld [vmem:[%s0 + $0x38] sm:$0xff]
  %v19 = vld [vmem:[%s0 + $0x40] sm:$0xff]
  %v20 = vld [vmem:[%s0 + $0x48] sm:$0xff]
  %v21 = vld [vmem:[%s0 + $0x50] sm:$0xff]
  %v22 = vld [vmem:[%s0 + $0x58] sm:$0xff]
  %v23 = vld [vmem:[%s0 + $0x60] sm:$0xff]
  %v24 = vld [vmem:[%s0 + $0x68] sm:$0xff]
  %v25 = vld [vmem:[%s0 + $0x70] sm:$0xff]
  %v26 = vld [vmem:[%s0 + $0x78] sm:$0xff]
  %v27 = vld [vmem:[%s1] sm:$0xff]
  %v28 = vld [vmem:[%s1 + $0x8] sm:$0xff]
  %v29 = vld [vmem:[%s1 + $0x10] sm:$0xff]
  %v30 = vld [vmem:[%s1 + $0x18] sm:$0xff]
  %v31 = vld [vmem:[%s1 + $0x20] sm:$0xff]
  %v32 = vld [vmem:[%s1 + $0x28] sm:$0xff]
  %v33 = vld [vmem:[%s1 + $0x30] sm:$0xff]
  %v34 = vld [vmem:[%s1 + $0x38] sm:$0xff]
  %v35 = vld [vmem:[%s1 + $0x40] sm:$0xff]
  %v36 = vld [vmem:[%s1 + $0x48] sm:$0xff]
  %v37 = vld [vmem:[%s1 + $0x50] sm:$0xff]
  %v38 = vld [vmem:[%s1 + $0x58] sm:$0xff]
  %v39 = vld [vmem:[%s1 + $0x60] sm:$0xf]
  %40 = vxpose.xlu0.b32.start [1/16] %v11, 128
  %41 = vxpose.xlu0.b32.cont [2/16] %v12, 128
  %42 = vxpose.xlu0.b32.cont [3/16] %v13, 128
  %43 = vxpose.xlu0.b32.cont [4/16] %v14, 128
  %44 = vxpose.xlu0.b32.cont [5/16] %v15, 128
  %45 = vxpose.xlu0.b32.cont [6/16] %v16, 128
  %46 = vxpose.xlu0.b32.cont [7/16] %v17, 128
  %47 = vxpose.xlu0.b32.cont [8/16] %v18, 128
  %48 = vxpose.xlu0.b32.cont [9/16] %v19, 128
  %49 = vxpose.xlu0.b32.cont [10/16] %v20, 128
  %50 = vxpose.xlu0.b32.cont [11/16] %v21, 128
  %51 = vxpose.xlu0.b32.cont [12/16] %v22, 128
  %52 = vxpose.xlu0.b32.cont [13/16] %v23, 128
  %53 = vxpose.xlu0.b32.cont [14/16] %v24, 128
  %54 = vxpose.xlu0.b32.cont [15/16] %v25, 128
  %55 = vxpose.xlu0.b32.end [16/16] %v26, 128
  %v56 = vpop.trf.xlu0
  %v57 = vpop.trf.xlu0
  %v58 = vpop.trf.xlu0
  %v59 = vpop.trf.xlu0
  %v60 = vpop.trf.xlu0
  %v61 = vpop.trf.xlu0
  %v62 = vpop.trf.xlu0
  %v63 = vpop.trf.xlu0
  %v64 = vpop.trf.xlu0
  %v65 = vpop.trf.xlu0
  %v66 = vpop.trf.xlu0
  %v67 = vpop.trf.xlu0
  %v68 = vpop.trf.xlu0
  %v69 = vpop.trf.xlu0
  %v70 = vpop.trf.xlu0
  %v71 = vpop.trf.xlu0
  %72 = vmatpush.xpose.msra.mxu0 0.0
  %73 = vmatpush.xpose.msra.mxu0 0.0
  %74 = vmatpush.xpose.msra.mxu0 0.0
  %75 = vmatpush.xpose.msra.mxu0 %v39
  %76 = vmatpush.xpose.msra.mxu0 %v38
  %77 = vmatpush.xpose.msra.mxu0 %v37
  %78 = vmatpush.xpose.msra.mxu0 %v36
  %79 = vmatpush.xpose.msra.mxu0 %v35
  %80 = vmatpush.xpose.msra.mxu0 %v34
  %81 = vmatpush.xpose.msra.mxu0 %v33
  %82 = vmatpush.xpose.msra.mxu0 %v32
  %83 = vmatpush.xpose.msra.mxu0 %v31
  %84 = vmatpush.xpose.msra.mxu0 %v30
  %85 = vmatpush.xpose.msra.mxu0 %v29
  %86 = vmatpush.xpose.msra.mxu0 %v28
  %87 = vmatpush.xpose.msra.mxu0 %v27
  %88 = vmatmul.f32.gmra.mxu0 %v56
  %v89 = vpop.f32.mrf.mxu0
  %v90 = vadd.f32 0.0, %v89
  %91 = vmatmul.f32.gmra.mxu0 %v57
  %v92 = vpop.f32.mrf.mxu0
  %v93 = vadd.f32 0.0, %v92
  %94 = vmatmul.f32.gmra.mxu0 %v58
  %v95 = vpop.f32.mrf.mxu0
  %v96 = vadd.f32 0.0, %v95
  %97 = vmatmul.f32.gmra.mxu0 %v59
  %v98 = vpop.f32.mrf.mxu0
  %v99 = vadd.f32 0.0, %v98
  %100 = vmatmul.f32.gmra.mxu0 %v60
  %v101 = vpop.f32.mrf.mxu0
  %v102 = vadd.f32 0.0, %v101
  %103 = vmatmul.f32.gmra.mxu0 %v61
  %v104 = vpop.f32.mrf.mxu0
  %v105 = vadd.f32 0.0, %v104
  %106 = vmatmul.f32.gmra.mxu0 %v62
  %v107 = vpop.f32.mrf.mxu0
  %v108 = vadd.f32 0.0, %v107
  %109 = vmatmul.f32.gmra.mxu0 %v63
  %v110 = vpop.f32.mrf.mxu0
  %v111 = vadd.f32 0.0, %v110
  %112 = vdwg.mxu0
  %vm113 = vcmask 818176
  %114 = vst.msk [vmem:[%s2] sm:$0xff] %vm113, %v90
  %115 = vst.msk [vmem:[%s2 + $0x8] sm:$0xff] %vm113, %v93
  %116 = vst.msk [vmem:[%s2 + $0x10] sm:$0xff] %vm113, %v96
  %117 = vst.msk [vmem:[%s2 + $0x18] sm:$0xff] %vm113, %v99
  %118 = vst.msk [vmem:[%s2 + $0x20] sm:$0xff] %vm113, %v102
  %119 = vst.msk [vmem:[%s2 + $0x28] sm:$0xff] %vm113, %v105
  %120 = vst.msk [vmem:[%s2 + $0x30] sm:$0xff] %vm113, %v108
  %121 = vst.msk [vmem:[%s2 + $0x38] sm:$0xff] %vm113, %v111
  %s122 = scalar_lea.vmem %s0, 128
  %v123 = vld [vmem:[%s122] sm:$0xff]
  %v124 = vld [vmem:[%s122 + $0x8] sm:$0xff]
  %v125 = vld [vmem:[%s122 + $0x10] sm:$0xff]
  %v126 = vld [vmem:[%s122 + $0x18] sm:$0xff]
  %v127 = vld [vmem:[%s122 + $0x20] sm:$0xff]
  %v128 = vld [vmem:[%s122 + $0x28] sm:$0xff]
  %v129 = vld [vmem:[%s122 + $0x30] sm:$0xff]
  %v130 = vld [vmem:[%s122 + $0x38] sm:$0xff]
  %v131 = vld [vmem:[%s122 + $0x40] sm:$0xff]
  %v132 = vld [vmem:[%s122 + $0x48] sm:$0xff]
  %v133 = vld [vmem:[%s122 + $0x50] sm:$0xff]
  %v134 = vld [vmem:[%s122 + $0x58] sm:$0xff]
  %v135 = vld [vmem:[%s122 + $0x60] sm:$0xff]
  %v136 = vld [vmem:[%s122 + $0x68] sm:$0xff]
  %v137 = vld [vmem:[%s122 + $0x70] sm:$0xff]
  %v138 = vld [vmem:[%s122 + $0x78] sm:$0xff]
  %v139 = vld [vmem:[%s1] sm:$0xff]
  %v140 = vld [vmem:[%s1 + $0x8] sm:$0xff]
  %v141 = vld [vmem:[%s1 + $0x10] sm:$0xff]
  %v142 = vld [vmem:[%s1 + $0x18] sm:$0xff]
  %v143 = vld [vmem:[%s1 + $0x20] sm:$0xff]
  %v144 = vld [vmem:[%s1 + $0x28] sm:$0xff]
  %v145 = vld [vmem:[%s1 + $0x30] sm:$0xff]
  %v146 = vld [vmem:[%s1 + $0x38] sm:$0xff]
  %v147 = vld [vmem:[%s1 + $0x40] sm:$0xff]
  %v148 = vld [vmem:[%s1 + $0x48] sm:$0xff]
  %v149 = vld [vmem:[%s1 + $0x50] sm:$0xff]
  %v150 = vld [vmem:[%s1 + $0x58] sm:$0xff]
  %v151 = vld [vmem:[%s1 + $0x60] sm:$0xf]
  %152 = vxpose.xlu0.b32.start [1/16] %v123, 128
  %153 = vxpose.xlu0.b32.cont [2/16] %v124, 128
  %154 = vxpose.xlu0.b32.cont [3/16] %v125, 128
  %155 = vxpose.xlu0.b32.cont [4/16] %v126, 128
  %156 = vxpose.xlu0.b32.cont [5/16] %v127, 128
  %157 = vxpose.xlu0.b32.cont [6/16] %v128, 128
  %158 = vxpose.xlu0.b32.cont [7/16] %v129, 128
  %159 = vxpose.xlu0.b32.cont [8/16] %v130, 128
  %160 = vxpose.xlu0.b32.cont [9/16] %v131, 128
  %161 = vxpose.xlu0.b32.cont [10/16] %v132, 128
  %162 = vxpose.xlu0.b32.cont [11/16] %v133, 128
  %163 = vxpose.xlu0.b32.cont [12/16] %v134, 128
  %164 = vxpose.xlu0.b32.cont [13/16] %v135, 128
  %165 = vxpose.xlu0.b32.cont [14/16] %v136, 128
  %166 = vxpose.xlu0.b32.cont [15/16] %v137, 128
  %167 = vxpose.xlu0.b32.end [16/16] %v138, 128
  %v168 = vpop.trf.xlu0
  %v169 = vpop.trf.xlu0
  %v170 = vpop.trf.xlu0
  %v171 = vpop.trf.xlu0
  %v172 = vpop.trf.xlu0
  %v173 = vpop.trf.xlu0
  %v174 = vpop.trf.xlu0
  %v175 = vpop.trf.xlu0
  %v176 = vpop.trf.xlu0
  %v177 = vpop.trf.xlu0
  %v178 = vpop.trf.xlu0
  %v179 = vpop.trf.xlu0
  %v180 = vpop.trf.xlu0
  %v181 = vpop.trf.xlu0
  %v182 = vpop.trf.xlu0
  %v183 = vpop.trf.xlu0
  %184 = vmatpush.xpose.msra.mxu0 0.0
  %185 = vmatpush.xpose.msra.mxu0 0.0
  %186 = vmatpush.xpose.msra.mxu0 0.0
  %187 = vmatpush.xpose.msra.mxu0 %v151
  %188 = vmatpush.xpose.msra.mxu0 %v150
  %189 = vmatpush.xpose.msra.mxu0 %v149
  %190 = vmatpush.xpose.msra.mxu0 %v148
  %191 = vmatpush.xpose.msra.mxu0 %v147
  %192 = vmatpush.xpose.msra.mxu0 %v146
  %193 = vmatpush.xpose.msra.mxu0 %v145
  %194 = vmatpush.xpose.msra.mxu0 %v144
  %195 = vmatpush.xpose.msra.mxu0 %v143
  %196 = vmatpush.xpose.msra.mxu0 %v142
  %197 = vmatpush.xpose.msra.mxu0 %v141
  %198 = vmatpush.xpose.msra.mxu0 %v140
  %199 = vmatpush.xpose.msra.mxu0 %v139
  %200 = vmatmul.f32.gmra.mxu0 %v168
  %v201 = vpop.f32.mrf.mxu0
  %v202 = vadd.f32 0.0, %v201
  %203 = vmatmul.f32.gmra.mxu0 %v169
  %v204 = vpop.f32.mrf.mxu0
  %v205 = vadd.f32 0.0, %v204
  %206 = vmatmul.f32.gmra.mxu0 %v170
  %v207 = vpop.f32.mrf.mxu0
  %v208 = vadd.f32 0.0, %v207
  %209 = vmatmul.f32.gmra.mxu0 %v171
  %v210 = vpop.f32.mrf.mxu0
  %v211 = vadd.f32 0.0, %v210
  %212 = vmatmul.f32.gmra.mxu0 %v172
  %v213 = vpop.f32.mrf.mxu0
  %v214 = vadd.f32 0.0, %v213
  %215 = vmatmul.f32.gmra.mxu0 %v173
  %v216 = vpop.f32.mrf.mxu0
  %v217 = vadd.f32 0.0, %v216
  %218 = vmatmul.f32.gmra.mxu0 %v174
  %v219 = vpop.f32.mrf.mxu0
  %v220 = vadd.f32 0.0, %v219
  %221 = vmatmul.f32.gmra.mxu0 %v175
  %v222 = vpop.f32.mrf.mxu0
  %v223 = vadd.f32 0.0, %v222
  %224 = vdwg.mxu0
  %s225 = scalar_lea.vmem %s2, 64
  %226 = vst.msk [vmem:[%s225] sm:$0xff] %vm113, %v202
  %227 = vst.msk [vmem:[%s225 + $0x8] sm:$0xff] %vm113, %v205
  %228 = vst.msk [vmem:[%s225 + $0x10] sm:$0xff] %vm113, %v208
  %229 = vst.msk [vmem:[%s225 + $0x18] sm:$0xff] %vm113, %v211
  %230 = vst.msk [vmem:[%s225 + $0x20] sm:$0xff] %vm113, %v214
  %231 = vst.msk [vmem:[%s225 + $0x28] sm:$0xff] %vm113, %v217
  %232 = vst.msk [vmem:[%s225 + $0x30] sm:$0xff] %vm113, %v220
  %233 = vst.msk [vmem:[%s225 + $0x38] sm:$0xff] %vm113, %v223
  // Predicated region
  $region10: #{face_bright_head.1} parent=0 // pred_check
    _
  $region11: #{face_bright_head.1} parent=0 // pred_check_branch
    %235 = sbr.rel (0) target = $region13
  $region12: #{face_bright_head.1} parent=0 // pred_region
    _
  $region13: #{face_bright_head.1} parent=0 // pred_fallthru
    _
  // Predicated region
  $region14: #{face_bright_head.1} parent=0 // pred_check
    _
  $region15: #{face_bright_head.1} parent=0 // pred_check_branch
    %237 = sbr.rel (0) target = $region17
  $region16: #{face_bright_head.1} parent=0 // pred_region
    _
  $region17: #{face_bright_head.1} parent=0 // pred_fallthru
    _

</llo_original>
